<compile_context>
chip_gen: v5e
topology: v5e:2x2
jax: 0.10.0
libtpu: 0.0.40
codegen_flags: <defaults>
</compile_context>

<pallas_src>
import jax
import jax.numpy as jnp
from jax import lax
from jax.experimental import pallas as pl
from jax.experimental.pallas import tpu as pltpu

G = 9.81   # gravitational constant (module's self.g)
L = 1.0    # pendulum length        (module's self.l)

_LANES = 128
_SAMPLES_PER_ROW = _LANES // 2       # 64 (theta, theta_dot) pairs per 128-lane row
_ROW_ALIGN = 8                       # f32 native sublane tile
_MAX_TILE_ROWS = 4096                # 2 MiB f32 block cap (v7x-safe with temporaries)


def _pendulum_kernel(x_ref, o_ref):
    # x: [tb, 128]; even lanes = theta, odd lanes = theta_dot (same sample).
    x = x_ref[...]
    # Lane rotations (XLU):
    #   shift=127 (== -1 mod 128): nxt[i] = x[i + 1]  -> theta_dot onto even lanes
    #   shift=1:                   prv[i] = x[i - 1]  -> theta     onto odd  lanes
    # Wrapped lanes (127 for nxt, 0 for prv) are never selected by the parity
    # mask below, so wraparound is harmless.
    nxt = pltpu.roll(x, 127, 1)
    prv = pltpu.roll(x, 1, 1)
    # Parity mask hoisted to a single (1, 128) row; jnp.where broadcasts it
    # over the (tb, 128) tile instead of materializing a full-shape i32 iota.
    lane = lax.broadcasted_iota(jnp.int32, (1, _LANES), 1)
    is_even = (lane & 1) == 0
    # TODO(synk): if the caller guarantees |theta| <= pi, a reduced-range sin
    # polynomial would cut the VALU work that binds on v7x; full-range jnp.sin
    # is kept for exact parity with torch.sin.
    o_ref[...] = jnp.where(is_even, nxt, (-(G / L)) * jnp.sin(prv))


def pendulum_deriv_lane_dense(x, *, tile_rows=2048):
    """Derivative on the resident lane-dense [rows, 128] float32 layout.

    Intended for integrators that keep the padded lane-dense state across
    steps (no per-call pad / reshape / slice HBM passes).
    """
    rows, lanes = x.shape
    assert lanes == _LANES, "lane-dense layout must be [rows, 128]"
    assert x.dtype == jnp.float32, "kernel path assumes float32 (8,128) tiles"

    tile_rows = max(_ROW_ALIGN, min(int(tile_rows), _MAX_TILE_ROWS))
    tile_rows = (tile_rows // _ROW_ALIGN) * _ROW_ALIGN

    if rows <= _ROW_ALIGN:
        # Single block == full array, so the (8,128) divisibility rule does
        # not apply even if rows < 8.
        tb = rows
    else:
        # Force >=2 grid steps so ("parallel",) can shard across v7x's two
        # TensorCores; cap at tile_rows for streaming-sized blocks.
        half = pl.cdiv(pl.cdiv(rows, 2), _ROW_ALIGN) * _ROW_ALIGN
        tb = max(_ROW_ALIGN, min(tile_rows, half))
    # rows % tb != 0 is fine: the last partial block reads stale lanes and
    # evaluates sin on them, but the writeback is masked -> benign.  Do not
    # "fix" this with extra padding.
    return pl.pallas_call(
        _pendulum_kernel,
        out_shape=jax.ShapeDtypeStruct((rows, _LANES), x.dtype),
        grid_spec=pl.GridSpec(
            grid=(pl.cdiv(rows, tb),),
            in_specs=[pl.BlockSpec((tb, _LANES), lambda i: (i, 0))],
            out_specs=pl.BlockSpec((tb, _LANES), lambda i: (i, 0)),
        ),
        compiler_params=pltpu.CompilerParams(
            dimension_semantics=("parallel",)),
    )(x)


def single_pendulum_forward(t, y, *, tile_rows=2048, min_pallas_batch=4096):
    """Pallas equivalent of SinglePendulumSystem.forward(t, y).

    `t` is accepted for API parity but (as in the PyTorch module) unused.
    Batches below `min_pallas_batch` (or non-float32 inputs) use a fused jnp
    expression: the pallas_call launch + pad/reshape dwarfs the work there.
    """
    del t
    B, S = y.shape
    assert S == 2, "state must have 2 components (theta, theta_dot)"

    if B < min_pallas_batch or y.dtype != jnp.float32:
        return jnp.concatenate([y[:, 1:2], -(G / L) * jnp.sin(y[:, 0:1])], axis=1)

    # Pad only to a whole 128-lane row (64 samples).  sin(0) = 0 so the zero
    # padding is harmless and is sliced off at the end.  Hot-path callers
    # should keep the state permanently lane-dense and call
    # pendulum_deriv_lane_dense() directly to avoid these extra HBM passes.
    b_pad = pl.cdiv(B, _SAMPLES_PER_ROW) * _SAMPLES_PER_ROW
    y_p = jnp.pad(y, ((0, b_pad - B), (0, 0))) if b_pad != B else y
    rows = b_pad // _SAMPLES_PER_ROW
    out = pendulum_deriv_lane_dense(y_p.reshape(rows, _LANES),
                                    tile_rows=tile_rows)
    out = out.reshape(b_pad, S)
    return out[:B] if b_pad != B else out


def _reference(y):
    # Mirrors the torch forward exactly.
    return jnp.concatenate([y[:, 1:2], -(G / L) * jnp.sin(y[:, 0:1])], axis=1)


if __name__ == "__main__":
    key = jax.random.PRNGKey(0)
    k1, k2, k3, k4 = jax.random.split(key, 4)
    t = jnp.float32(0.0)  # unused, mirrors the torch signature

    # Case 1: tiny batch -> fused jnp dispatch (the common integrator case).
    y1 = jax.random.normal(k1, (6, 2), dtype=jnp.float32)
    out1 = jax.block_until_ready(single_pendulum_forward(t, y1))
    assert out1.shape == (6, 2) and out1.dtype == jnp.float32
    assert jnp.allclose(out1, _reference(y1), atol=1e-6, rtol=1e-6)

    # Case 2: force the Pallas path; B pads to 64 -> single full-array block.
    y2 = jax.random.normal(k2, (50, 2), dtype=jnp.float32)
    out2 = jax.block_until_ready(
        single_pendulum_forward(t, y2, min_pallas_batch=0))
    assert out2.shape == (50, 2) and out2.dtype == jnp.float32
    assert jnp.allclose(out2, _reference(y2), atol=1e-6, rtol=1e-6)

    # Case 3: force the Pallas path with a multi-step grid
    # (rows=24, tb=16 -> 2 grid steps, last block partial).
    y3 = jax.random.normal(k3, (1536, 2), dtype=jnp.float32)
    out3 = jax.block_until_ready(
        single_pendulum_forward(t, y3, min_pallas_batch=0))
    assert out3.shape == (1536, 2) and out3.dtype == jnp.float32
    assert jnp.allclose(out3, _reference(y3), atol=1e-6, rtol=1e-6)

    # Case 4: resident lane-dense layout (integrator hot path), direct call,
    # small tile to exercise multi-step pipelining.
    x4 = jax.random.normal(k4, (16, _LANES), dtype=jnp.float32)
    out4 = jax.block_until_ready(pendulum_deriv_lane_dense(x4, tile_rows=8))
    ref4 = _reference(x4.reshape(-1, 2)).reshape(16, _LANES)
    assert out4.shape == (16, _LANES) and out4.dtype == jnp.float32
    assert jnp.allclose(out4, ref4, atol=1e-6, rtol=1e-6)

    print("KERNEL_OK")
</pallas_src>

<mosaic_0001>
module attributes {stable_mosaic.version = 11 : i64} {
  func.func @_pendulum_kernel(%arg0: i32, %arg1: memref<1x128xf32, #tpu.memory_space<vmem>>, %arg2: memref<1x128xf32, #tpu.memory_space<vmem>>) attributes {dimension_semantics = [#tpu.dimension_semantics<parallel>], iteration_bounds = array<i64: 1>, scalar_prefetch = 0 : i64, scratch_operands = 0 : i64, tpu.core_type = #tpu.core_type<tc>, window_params = [{transform_indices = @transform_0, window_bounds = array<i64: 1, 128>}, {transform_indices = @transform_1, window_bounds = array<i64: 1, 128>}]} {
    %c0 = arith.constant 0 : index
    %c0_0 = arith.constant 0 : index
    %0 = vector.load %arg1[%c0, %c0_0] : memref<1x128xf32, #tpu.memory_space<vmem>>, vector<1x128xf32>
    %c127_i32 = arith.constant 127 : i32
    %1 = tpu.dynamic_rotate %0 by %c127_i32 dim 1 : vector<1x128xf32>, i32 -> vector<1x128xf32>
    %c1_i32 = arith.constant 1 : i32
    %2 = tpu.dynamic_rotate %0 by %c1_i32 dim 1 : vector<1x128xf32>, i32 -> vector<1x128xf32>
    %3 = tpu.iota {dimensions = array<i32: 1>} : vector<1x128xi32>
    %c1_i32_1 = arith.constant 1 : i32
    %4 = vector.broadcast %c1_i32_1 : i32 to vector<1x128xi32>
    %5 = arith.andi %3, %4 : vector<1x128xi32>
    %c0_i32 = arith.constant 0 : i32
    %6 = vector.broadcast %c0_i32 : i32 to vector<1x128xi32>
    %7 = arith.cmpi eq, %5, %6 : vector<1x128xi32>
    %8 = math.sin %2 : vector<1x128xf32>
    %cst = arith.constant -9.810000e+00 : f32
    %9 = vector.broadcast %cst : f32 to vector<1x128xf32>
    %10 = arith.mulf %9, %8 : vector<1x128xf32>
    %11 = arith.select %7, %1, %10 : vector<1x128xi1>, vector<1x128xf32>
    %c0_2 = arith.constant 0 : index
    %c0_3 = arith.constant 0 : index
    %12 = vector.load %arg2[%c0_2, %c0_3] : memref<1x128xf32, #tpu.memory_space<vmem>>, vector<1x128xf32>
    tpu.vector_store %arg2[%c0_2, %c0_3], %11 {strides = array<i32>} : memref<1x128xf32, #tpu.memory_space<vmem>>, vector<1x128xf32>,
    return
  }
  func.func @transform_0(%arg0: i32) -> (i32, i32) {
    %c0_i32 = arith.constant 0 : i32
    %c0_i32_0 = arith.constant 0 : i32
    return %arg0, %c0_i32 : i32, i32
  }
  func.func @transform_1(%arg0: i32) -> (i32, i32) {
    %c0_i32 = arith.constant 0 : i32
    %c0_i32_0 = arith.constant 0 : i32
    return %arg0, %c0_i32 : i32, i32
  }
}

</mosaic_0001>

<llo_original>
// kernel: tpu_custom_call.1
$region0: #{tpu_custom_call.1}
  #allocation0 [shape = 'u32[]', space=smem, size = 0x4, offset = 0x4, fixed_abs, tag = 'smem constant byte address 0x4 - core index']
  #allocation1 [shape = 'u32[72,128]{1,0:T(1,128)}', space=vmem, size = 0x9000, scoped, tag = 'internal scratch']
  %s0 = inlined_call_operand.hbm [shape: f32[1,128], index: 0, kind: input, shape index: {}]
  %s1 = inlined_call_operand.hbm [shape: f32[1,128], index: 1, kind: output, shape index: {}]
  %s2 = sld [smem:[#allocation0]]
  $region18: #{tpu_custom_call.1} parent=0
    _
  %s4 = ssub.s32 1, %s2
  %s5 = scalar_select 0, %s4, %s2
  $region1: #{tpu_custom_call.1} parent=0
    #allocation2 [shape = 'u8[512]{0}', space=vmem, size = 0x400, scoped, tag = 'input window, operand 0, single buffered']
    #allocation3 [shape = 's32[1]{0}', space=sflag, size = 0x4, scoped, tag = 'scoped memory for tpu_custom_call.1']
    #allocation4 [shape = 's32[1]{0}', space=sflag, size = 0x4, scoped, tag = 'scoped memory for tpu_custom_call.1']
    #allocation5 [shape = 'u8[512]{0}', space=vmem, size = 0x400, scoped, tag = 'output window, operand 0, single buffered']
    %6 = vsyncpa [#allocation3], 0
    %7 = vsyncpa [#allocation4], 0
    // Predicated region
    $region2: #{tpu_custom_call.1} parent=1 // pred_check
      _
    $region3: #{tpu_custom_call.1} parent=1 // pred_check_branch
      %9 = sbr.rel (0) target = $region5
    $region4: #{tpu_custom_call.1} parent=1 // pred_region
      %11 = vsyncadd [#allocation3], 0
      %s13 = sshll.u32 %s0, 4
      %s14 = int_to_ptr.hbm [resolvable:$true] %s13
      %s15 = sshll.u32 [#allocation2], 4
      %s16 = int_to_ptr.vmem [resolvable:$true] %s15
      %18 = dma.hbm_to_vmem [thread:$0]  %s14, 16, %s16, [#allocation3]
    $region5: #{tpu_custom_call.1} parent=1 // pred_fallthru
      _
    // Predicated region
    $region6: #{tpu_custom_call.1} parent=1 // pred_check
      _
    $region7: #{tpu_custom_call.1} parent=1 // pred_check_branch
      %20 = sbr.rel (0) target = $region9
    $region8: #{tpu_custom_call.1} parent=1 // pred_region
      %22 = dma.done [#allocation3], 16
    $region9: #{tpu_custom_call.1} parent=1 // pred_fallthru
      _
    %v23 = vld [vmem:[#allocation2] sm:$0x1]
    %24 = vrot.lane.b32.xlu0 %v23, 127
    %v25 = vpop.permute.xlu0 %24
    %26 = vrot.lane.b32.xlu0 %v23, 1
    %v27 = vpop.permute.xlu0 %26
    %v28 = vlaneseq
    %v29 = vand.u32 %v28, 127
    %v30 = vand.u32 %v29, 1
    %vm31 = vcmp.eq.s32.totalorder %v30, 0
    %v32 = vand.u32 2147483647, %v27
    %vm33 = vcmp.le.f32.partialorder %v32, 0.7853982
    %vm34 = vcmp.lt.s32.totalorder %v27, 0
    %v35 = vand.u32 %v27, 2139095040
    %v36 = vshrl.u32 %v35, 23
    %v37 = vsub.s32 %v36, 127
    %v38 = vand.u32 2147483647, %v27
    %v39 = vand.u32 %v38, 8388607
    %v40 = vor.u32 %v39, 8388608
    %v41 = vsub.s32 0, %v40
    %v42 = vadd.s32 %v37, 1
    %vm43 = vcmp.gt.s32.totalorder %v42, 0
    %v44 = vsel %vm43, %v42, 0
    %v45 = vshrl.u32 %v44, 5
    %v46 = vand.u32 %v44, 31
    %v47 = vsub.s32 32, %v46
    %v48 = vshrl.u32 683565275, %v47
    %v49 = vshll.u32 683565275, %v46
    %v50 = vshrl.u32 2475754826, %v47
    %v51 = vor.u32 %v49, %v50
    %v52 = vshll.u32 2475754826, %v46
    %v53 = vshrl.u32 2131351028, %v47
    %v54 = vor.u32 %v52, %v53
    %v55 = vshll.u32 2131351028, %v46
    %v56 = vshrl.u32 2102212464, %v47
    %v57 = vor.u32 %v55, %v56
    %v58 = vshll.u32 2102212464, %v46
    %v59 = vshrl.u32 920167782, %v47
    %v60 = vor.u32 %v58, %v59
    %v61 = vshll.u32 920167782, %v46
    %v62 = vshrl.u32 1326507024, %v47
    %v63 = vor.u32 %v61, %v62
    %vm64 = vcmp.lt.s32.totalorder %v45, 1
    %vm65 = vcmp.lt.s32.totalorder %v45, 2
    %vm66 = vcmp.lt.s32.totalorder %v45, 3
    %vm67 = vcmp.lt.s32.totalorder %v45, 4
    %v68 = vsel %vm64, %v48, %v51
    %v69 = vsel %vm67, %v57, 2102212464
    %v70 = vsel %vm66, %v54, %v69
    %v71 = vsel %vm65, %v68, %v70
    %v72 = vsel %vm64, %v51, %v54
    %v73 = vsel %vm67, %v60, 920167782
    %v74 = vsel %vm66, %v57, %v73
    %v75 = vsel %vm65, %v72, %v74
    %v76 = vsel %vm64, %v54, %v57
    %v77 = vsel %vm67, %v63, 1326507024
    %v78 = vsel %vm66, %v60, %v77
    %v79 = vsel %vm65, %v76, %v78
    %v80 = vshll.u32 %v40, 8
    %v81 = vand.u32 %v80, 65535
    %v82 = vshrl.u32 %v80, 16
    %v83 = vand.u32 %v79, 65535
    %v84 = vshrl.u32 %v79, 16
    %v85 = vmul.u32 %v81, %v83
    %v86 = vmul.u32 %v81, %v84
    %v87 = vmul.u32 %v82, %v83
    %v88 = vmul.u32 %v82, %v84
    %v89 = vshll.u32 %v86, 16
    %v90 = vshrl.u32 %v86, 16
    %v91 = vshll.u32 %v87, 16
    %v92 = vshrl.u32 %v87, 16
    %vm93 = vc.u32 %v85, %v89
    %v94 = vsel %vm93, 1, 0
    %v95 = vadd.s32 %v85, %v89
    %v96 = vadd.s32 %v88, %v94
    %vm97 = vc.u32 %v95, %v91
    %v98 = vsel %vm97, 1, 0
    %v99 = vadd.s32 %v95, %v91
    %v100 = vadd.s32 %v96, %v98
    %v101 = vadd.s32 %v100, %v90
    %v102 = vadd.s32 %v101, %v92
    %v103 = vand.u32 %v80, 65535
    %v104 = vshrl.u32 %v80, 16
    %v105 = vand.u32 %v75, 65535
    %v106 = vshrl.u32 %v75, 16
    %v107 = vmul.u32 %v103, %v105
    %v108 = vmul.u32 %v103, %v106
    %v109 = vmul.u32 %v104, %v105
    %v110 = vmul.u32 %v104, %v106
    %v111 = vshll.u32 %v108, 16
    %v112 = vshrl.u32 %v108, 16
    %v113 = vshll.u32 %v109, 16
    %v114 = vshrl.u32 %v109, 16
    %vm115 = vc.u32 %v107, %v111
    %v116 = vsel %vm115, 1, 0
    %v117 = vadd.s32 %v107, %v111
    %v118 = vadd.s32 %v110, %v116
    %vm119 = vc.u32 %v117, %v113
    %v120 = vsel %vm119, 1, 0
    %v121 = vadd.s32 %v117, %v113
    %v122 = vadd.s32 %v118, %v120
    %v123 = vadd.s32 %v122, %v112
    %v124 = vadd.s32 %v123, %v114
    %v125 = vmul.u32 %v80, %v71
    %v126 = vadd.s32 %v102, %v121
    %vm127 = vc.u32 %v102, %v121
    %v128 = vadd.s32 %v124, 1
    %v129 = vsel %vm127, %v128, %v124
    %v130 = vadd.s32 %v125, %v129
    %v131 = vadd.s32 %v130, 536870912
    %v132 = vshrl.u32 %v131, 30
    %v133 = vshll.u32 %v132, 30
    %v134 = vsub.s32 %v130, %v133
    %vm135 = vcmp.lt.s32.totalorder %v134, 0
    %v136 = vsub.s32 0, %v134
    %v137 = vsel %vm135, %v136, %v134
    %v138 = vclz %v137
    %v139 = vsub.s32 %v138, 2
    %vm140 = vcmp.gt.s32.totalorder 0, %v139
    %v141 = vsel %vm140, 0, %v139
    %v142 = vsub.s32 32, %v141
    %v143 = vshll.u32 %v134, %v141
    %v144 = vshrl.u32 %v126, %v142
    %v145 = vor.u32 %v143, %v144
    %v146 = vsub.s32 4294967266, %v141
    %v147 = vadd.s32 %v146, 127
    %v148 = vshll.u32 %v147, 23
    %v149 = vor.u32 4788187, %v148
    %v150 = vand.u32 2147483647, %v149
    %v152 = vcvt.s32.f32 %v145
    %v153 = vmul.f32 %v152, %v150
    %v154 = vxor.u32 %v153, 2147483648
    %v155 = vsel %vm34, %v154, %v153
    %v156 = vsub.s32 4, %v132
    %v157 = vsel %vm34, %v156, %v132
    %v158 = vsel %vm33, %v27, %v155
    %v159 = vsel %vm33, 0, %v157
    %v160 = vmul.f32 %v158, %v158
    %v161 = vmul.f32 %v160, -0.001358992
    %v162 = vadd.f32 %v161, 0.041655596
    %v163 = vmul.f32 %v160, %v162
    %v164 = vadd.f32 %v163, -0.4999988
    %v165 = vmul.f32 %v160, %v164
    %v166 = vadd.f32 1.0, %v165
    %v167 = vmul.f32 %v158, %v158
    %v168 = vmul.f32 %v167, -0.00019511016
    %v169 = vadd.f32 %v168, 0.008332121
    %v170 = vmul.f32 %v167, %v169
    %v171 = vadd.f32 %v170, -0.16666654
    %v172 = vmul.f32 %v167, %v171
    %v173 = vadd.f32 %v172, 1.0
    %v174 = vmul.f32 %v173, %v158
    %vm175 = vweird.f32 %v27
    %v176 = vadd.s32 %v159, 3
    %v177 = vand.u32 %v176, 3
    %vm178 = vcmp.lt.s32.totalorder %v177, 2
    %vm179 = vcmp.eq.s32.totalorder %v177, 0
    %v180 = vxor.u32 %v174, 2147483648
    %v181 = vsel %vm179, %v166, %v180
    %vm182 = vcmp.eq.s32.totalorder %v177, 2
    %v183 = vxor.u32 %v166, 2147483648
    %v184 = vsel %vm182, %v183, %v174
    %v185 = vsel %vm178, %v181, %v184
    %v186 = vsel %vm175, nan, %v185
    %v187 = vmul.f32 %v186, -9.81
    %v188 = vsel %vm31, %v25, %v187
    %189 = vst [vmem:[#allocation5] sm:$0x1] %v188
    // Predicated region
    $region10: #{tpu_custom_call.1} parent=1 // pred_check
      _
    $region11: #{tpu_custom_call.1} parent=1 // pred_check_branch
      %191 = sbr.rel (0) target = $region13
    $region12: #{tpu_custom_call.1} parent=1 // pred_region
      %193 = vsyncadd [#allocation4], 0
      %s195 = sshll.u32 [#allocation5], 4
      %s196 = int_to_ptr.vmem [resolvable:$true] %s195
      %s197 = sshll.u32 %s1, 4
      %s198 = int_to_ptr.hbm [resolvable:$true] %s197
      %200 = dma.vmem_to_hbm [thread:$0]  %s196, 16, %s198, [#allocation4]
    $region13: #{tpu_custom_call.1} parent=1 // pred_fallthru
      _
    // Predicated region
    $region14: #{tpu_custom_call.1} parent=1 // pred_check
      _
    $region15: #{tpu_custom_call.1} parent=1 // pred_check_branch
      %202 = sbr.rel (0) target = $region17
    $region16: #{tpu_custom_call.1} parent=1 // pred_region
      %204 = dma.done [#allocation4], 16
    $region17: #{tpu_custom_call.1} parent=1 // pred_fallthru
      _
    %205 = vsyncpa [#allocation3], 1
    %206 = vsyncpa [#allocation4], 1

</llo_original>
